<compile_context>
chip_gen: v6e
topology: v6e:2x2x1
jax: 0.10.0
libtpu: 0.0.40
codegen_flags: <defaults>
</compile_context>

<pallas_src>
import numpy as np

import jax
import jax.numpy as jnp
from jax.experimental import pallas as pl
from jax.experimental.pallas import tpu as pltpu


def _identity_kernel(x_ref, o_ref):
    # Pure pass-through: load the single sublane/lane-dense block and store it.
    o_ref[...] = x_ref[...]


def identity_passthrough(x: jax.Array) -> jax.Array:
    """Identity over a small tensor via a single ungridded Pallas call.

    Demo-only plumbing; the module forward itself never calls this (the
    reference forward is `pass`).
    """
    total = int(np.prod(x.shape))
    itemsize = jnp.dtype(x.dtype).itemsize

    # Sublane- and lane-dense 2D view: (8, total//8) with the last dim a
    # multiple of 128 packs the data into full vregs (unmasked vld/vst).
    if total % (8 * 128) == 0:
        flat = x.reshape(8, total // 8)
    else:
        # Fallback for shapes the demo doesn't care about.
        flat = x.reshape(1, total)

    y = pl.pallas_call(
        _identity_kernel,
        out_shape=jax.ShapeDtypeStruct(flat.shape, flat.dtype),
        # Ungridded whole-array VMEM refs: no grid, no pipeline overhead.
        in_specs=[pl.BlockSpec(memory_space=pltpu.MemorySpace.VMEM)],
        out_specs=pl.BlockSpec(memory_space=pltpu.MemorySpace.VMEM),
        # Advisory hint: scheduler should treat this call as negligible.
        cost_estimate=pl.CostEstimate(
            flops=0,
            transcendentals=0,
            bytes_accessed=2 * total * itemsize,
        ),
    )(flat)
    return y.reshape(x.shape)


class TimeStepEmbSequantial:
    """JAX mirror of the (empty) PyTorch TimeStepEmbSequantial module."""

    def __init__(self, *args, **kwargs):
        # Reference __init__ registers no parameters.
        pass

    def __call__(self, *args, **kwargs):
        # Reference forward is `pass` -> returns None.  No kernel launch here:
        # the fastest pass-through on every TPU generation is no kernel at all.
        return None


if __name__ == "__main__":
    key = jax.random.PRNGKey(0)
    # Small NCHW input consistent with what an SD UNet/decoder block would see.
    x = jax.random.normal(key, (2, 4, 16, 16), dtype=jnp.float32)
    x_host = np.asarray(jax.device_get(x))

    # Exact-semantics module call (returns None, like the PyTorch forward).
    mod = TimeStepEmbSequantial()
    out = mod(x)
    assert out is None, "forward must return None to match the reference"

    # Run the demonstration Pallas identity kernel once and block on it.
    y = identity_passthrough(x)
    y = jax.block_until_ready(y)
    assert y.shape == x_host.shape and y.dtype == jnp.float32
    assert np.array_equal(np.asarray(jax.device_get(y)), x_host), (
        "identity pass-through mismatch"
    )

    print("KERNEL_OK")
</pallas_src>

<mosaic_0001>
module attributes {stable_mosaic.version = 11 : i64} {
  func.func @_identity_kernel(%arg0: memref<8x256xf32, #tpu.memory_space<vmem>>, %arg1: memref<8x256xf32, #tpu.memory_space<vmem>>) attributes {dimension_semantics = [], scalar_prefetch = 0 : i64, scratch_operands = 0 : i64, tpu.core_type = #tpu.core_type<tc>} {
    %c0 = arith.constant 0 : index
    %c0_0 = arith.constant 0 : index
    %0 = vector.load %arg0[%c0, %c0_0] : memref<8x256xf32, #tpu.memory_space<vmem>>, vector<8x256xf32>
    %c0_1 = arith.constant 0 : index
    %c0_2 = arith.constant 0 : index
    %1 = vector.load %arg1[%c0_1, %c0_2] : memref<8x256xf32, #tpu.memory_space<vmem>>, vector<8x256xf32>
    tpu.vector_store %arg1[%c0_1, %c0_2], %0 {strides = array<i32>} : memref<8x256xf32, #tpu.memory_space<vmem>>, vector<8x256xf32>,
    return
  }
}

</mosaic_0001>

<llo_original>
// kernel: tpu_custom_call.1
$region0: #{tpu_custom_call.1}
  #allocation0 [shape = 'u32[]', space=smem, size = 0x4, offset = 0x4, fixed_abs, tag = 'smem constant byte address 0x4 - core index']
  #allocation1 [shape = 'u32[144,128]{1,0:T(1,128)}', space=vmem, size = 0x12000, scoped, tag = 'internal scratch']
  %s0 = inlined_call_operand.hbm [shape: f32[8,256], index: 0, kind: input, shape index: {}]
  %s1 = inlined_call_operand.hbm [shape: f32[8,256], index: 1, kind: output, shape index: {}]
  %s2 = sld [smem:[#allocation0]]
  $region18: #{tpu_custom_call.1} parent=0
    _
  %s4 = ssub.s32 1, %s2
  %s5 = scalar_select 0, %s4, %s2
  $region1: #{tpu_custom_call.1} parent=0
    #allocation2 [shape = 'u8[8192]{0}', space=vmem, size = 0x2000, scoped, tag = 'input window, operand 0, single buffered']
    #allocation3 [shape = 's32[1]{0}', space=sflag, size = 0x4, scoped, tag = 'scoped memory for tpu_custom_call.1']
    #allocation4 [shape = 's32[1]{0}', space=sflag, size = 0x4, scoped, tag = 'scoped memory for tpu_custom_call.1']
    #allocation5 [shape = 'u8[8192]{0}', space=vmem, size = 0x2000, scoped, tag = 'output window, operand 0, single buffered']
    %6 = vsyncpa [#allocation3], 0
    %7 = vsyncpa [#allocation4], 0
    // Predicated region
    $region2: #{tpu_custom_call.1} parent=1 // pred_check
      _
    $region3: #{tpu_custom_call.1} parent=1 // pred_check_branch
      %9 = sbr.rel (0) target = $region5
    $region4: #{tpu_custom_call.1} parent=1 // pred_region
      %s11 = ssub.s32 256, 256
      %12 = vsyncadd [#allocation3], %s11
      %s14 = sshll.u32 [#allocation2], 4
      %s15 = int_to_ptr.vmem [resolvable:$true] %s14
      %17 = dma.hbm_to_vmem [thread:$0]  %s0, 256, %s15, [#allocation3]
    $region5: #{tpu_custom_call.1} parent=1 // pred_fallthru
      _
    // Predicated region
    $region6: #{tpu_custom_call.1} parent=1 // pred_check
      _
    $region7: #{tpu_custom_call.1} parent=1 // pred_check_branch
      %19 = sbr.rel (0) target = $region9
    $region8: #{tpu_custom_call.1} parent=1 // pred_region
      %20 = dma.done [#allocation3], 256
    $region9: #{tpu_custom_call.1} parent=1 // pred_fallthru
      _
    %v21 = vld [vmem:[#allocation2] sm:$0xff]
    %v22 = vld [vmem:[#allocation2 + $0x8] sm:$0xff]
    %23 = vst [vmem:[#allocation5] sm:$0xff] %v21
    %24 = vst [vmem:[#allocation5 + $0x8] sm:$0xff] %v22
    // Predicated region
    $region10: #{tpu_custom_call.1} parent=1 // pred_check
      _
    $region11: #{tpu_custom_call.1} parent=1 // pred_check_branch
      %26 = sbr.rel (0) target = $region13
    $region12: #{tpu_custom_call.1} parent=1 // pred_region
      %s28 = ssub.s32 256, 256
      %29 = vsyncadd [#allocation4], %s28
      %s31 = sshll.u32 [#allocation5], 4
      %s32 = int_to_ptr.vmem [resolvable:$true] %s31
      %34 = dma.vmem_to_hbm [thread:$0]  %s32, 256, %s1, [#allocation4]
    $region13: #{tpu_custom_call.1} parent=1 // pred_fallthru
      _
    // Predicated region
    $region14: #{tpu_custom_call.1} parent=1 // pred_check
      _
    $region15: #{tpu_custom_call.1} parent=1 // pred_check_branch
      %36 = sbr.rel (0) target = $region17
    $region16: #{tpu_custom_call.1} parent=1 // pred_region
      %37 = dma.done [#allocation4], 256
    $region17: #{tpu_custom_call.1} parent=1 // pred_fallthru
      _
    %38 = vsyncpa [#allocation3], 1
    %39 = vsyncpa [#allocation4], 1

</llo_original>
